<compile_context>
chip_gen: v7x
topology: tpu7x:2x2x1
jax: 0.10.0
libtpu: 0.0.40
codegen_flags: <defaults>
</compile_context>

<pallas_src>
import math
import numpy as np
import jax
import jax.numpy as jnp
from jax import lax
from jax.experimental import pallas as pl
from jax.experimental.pallas import tpu as pltpu

HIDDEN = 32  # stand-in for the module default hidden_size=300 (small, synthetic)


# --------------------- Kernel A: fused bias+ReLU+input projection ---------------------
# gi_nodes = relu(node + bias) @ W_ih_all, W_ih_all = [f_r | f_z | f_n | b_r | b_z | b_n]
# b_ih is NOT added here; it is added per timestep inside the recurrence so zero-padded
# timesteps also receive it (matching GRU-on-zero-padded-input semantics).

def _input_proj_kernel(x_ref, b_ref, w_ref, o_ref):
    msg = jnp.maximum(x_ref[...] + b_ref[...], 0.0)
    o_ref[...] = jnp.dot(msg, w_ref[...], preferred_element_type=jnp.float32)


def input_projection(node_pad, bias, w_all):
    n_pad, h = node_pad.shape
    k = w_all.shape[1]
    vmem = pl.BlockSpec(memory_space=pltpu.MemorySpace.VMEM)
    return pl.pallas_call(
        _input_proj_kernel,
        out_shape=jax.ShapeDtypeStruct((n_pad, k), jnp.float32),
        in_specs=[vmem, vmem, vmem],
        out_specs=vmem,
    )(node_pad, bias.reshape(1, h), w_all)


# --------------------- Kernel B: fused bidirectional GRU recurrence ---------------------

def _bigru_kernel(gi_ref, h0_ref, whh_ref, bih_ref, bhh_ref, out_ref):
    # gi_ref : (6, T, TB, H)  precomputed input projections (no b_ih), zeros at pads
    #          leading index = dir*3 + gate, gate order [r, z, n], dir 0=fwd 1=bwd
    # h0_ref : (TB, H)
    # whh_ref: (6, H, H)      per-(dir,gate) hidden weights (already transposed)
    # bih_ref: (6, 1, H)      per-(dir,gate) input biases
    # bhh_ref: (6, 1, H)      per-(dir,gate) hidden biases
    # out_ref: (2, T, TB, H)  [0] = forward hiddens, [1] = backward hiddens
    T = gi_ref.shape[1]

    # Hoist all loop-invariant weights/biases out of the time loop.
    whh = [whh_ref[i] for i in range(6)]
    bih = [bih_ref[i] for i in range(6)]
    bhh = [bhh_ref[i] for i in range(6)]

    def cell(h, gi_r, gi_z, gi_n, d):
        o = 3 * d
        gh_r = jnp.dot(h, whh[o + 0], preferred_element_type=jnp.float32) + bhh[o + 0]
        gh_z = jnp.dot(h, whh[o + 1], preferred_element_type=jnp.float32) + bhh[o + 1]
        gh_n = jnp.dot(h, whh[o + 2], preferred_element_type=jnp.float32) + bhh[o + 2]
        r = jax.nn.sigmoid(gi_r + gh_r)
        z = jax.nn.sigmoid(gi_z + gh_z)
        n = jnp.tanh(gi_n + r * gh_n)
        return (1.0 - z) * n + z * h

    def step(i, carry):
        h_f, h_b = carry
        tb = T - 1 - i
        # The two chains are independent -> their MXU/EUP work interleaves (ILP).
        h_f = cell(h_f,
                   gi_ref[0, i] + bih[0],
                   gi_ref[1, i] + bih[1],
                   gi_ref[2, i] + bih[2], 0)
        h_b = cell(h_b,
                   gi_ref[3, tb] + bih[3],
                   gi_ref[4, tb] + bih[4],
                   gi_ref[5, tb] + bih[5], 1)
        out_ref[0, i] = h_f
        out_ref[1, tb] = h_b
        return (h_f, h_b)

    h0 = h0_ref[...]
    lax.fori_loop(0, T, step, (h0, h0), unroll=True)


def bidir_gru(gi, h0, whh, bih, bhh, tile_b=8):
    six, T, B, H = gi.shape
    assert six == 6 and B % tile_b == 0
    return pl.pallas_call(
        _bigru_kernel,
        out_shape=jax.ShapeDtypeStruct((2, T, B, H), jnp.float32),
        grid=(B // tile_b,),
        in_specs=[
            pl.BlockSpec((6, T, tile_b, H), lambda b: (0, 0, b, 0)),
            pl.BlockSpec((tile_b, H), lambda b: (b, 0)),
            pl.BlockSpec((6, H, H), lambda b: (0, 0, 0)),
            pl.BlockSpec((6, 1, H), lambda b: (0, 0, 0)),
            pl.BlockSpec((6, 1, H), lambda b: (0, 0, 0)),
        ],
        out_specs=pl.BlockSpec((2, T, tile_b, H), lambda b: (0, 0, b, 0)),
        compiler_params=pltpu.CompilerParams(
            dimension_semantics=("parallel",),       # batch-parallel -> both TCs on v7x
            vmem_limit_bytes=64 * 1024 * 1024,
        ),
    )(gi, h0, whh, bih, bhh)


# ----------------------------- parameters -----------------------------

def init_params(key, hidden):
    k = 1.0 / math.sqrt(hidden)
    keys = jax.random.split(key, 9)

    def u(kk, shape):
        return jax.random.uniform(kk, shape, jnp.float32, -k, k)

    return dict(
        bias=u(keys[0], (hidden,)),
        # forward direction GRU weights (stored transposed: (H, 3H), gates r|z|n)
        wih_f=u(keys[1], (hidden, 3 * hidden)),
        whh_f=u(keys[2], (hidden, 3 * hidden)),
        bih_f=u(keys[3], (3 * hidden,)),
        bhh_f=u(keys[4], (3 * hidden,)),
        # backward direction GRU weights
        wih_b=u(keys[5], (hidden, 3 * hidden)),
        whh_b=u(keys[6], (hidden, 3 * hidden)),
        bih_b=u(keys[7], (3 * hidden,)),
        bhh_b=u(keys[8], (3 * hidden,)),
    )


def pack_params(params, H):
    """Repack canonical (H,3H)/(3H,) params into per-(dir,gate) kernel layout."""
    def split3(w):
        return [w[:, g * H:(g + 1) * H] for g in range(3)]

    def split3b(b):
        return [b[g * H:(g + 1) * H] for g in range(3)]

    wih_all = jnp.concatenate(split3(params["wih_f"]) + split3(params["wih_b"]), axis=1)  # (H, 6H)
    whh_all = jnp.stack(split3(params["whh_f"]) + split3(params["whh_b"]), axis=0)        # (6, H, H)
    bih_all = jnp.stack(split3b(params["bih_f"]) + split3b(params["bih_b"]), axis=0)      # (6, H)
    bhh_all = jnp.stack(split3b(params["bhh_f"]) + split3b(params["bhh_b"]), axis=0)      # (6, H)
    return wih_all, whh_all, bih_all.reshape(6, 1, H), bhh_all.reshape(6, 1, H)


# ----------------------------- model forward -----------------------------

def batch_gru_forward(node, a_scope, params, tile_b=8):
    """node: (N, H); a_scope: python list of segment lengths summing to N."""
    N, H = node.shape
    lengths = np.asarray(a_scope, dtype=np.int64)
    B = len(lengths)
    T = int(lengths.max())

    # Static (trace-time) scatter/gather indices for padding and unpadding.
    batch_idx = np.repeat(np.arange(B), lengths)
    time_idx = np.concatenate([np.arange(L) for L in lengths])
    batch_idx_j = jnp.asarray(batch_idx, jnp.int32)
    time_idx_j = jnp.asarray(time_idx, jnp.int32)

    wih_all, whh_all, bih_all, bhh_all = pack_params(params, H)

    # ---- Kernel A: fused relu(node + bias) @ W_ih for both directions, all gates.
    n_pad = ((N + 7) // 8) * 8
    node_pad = jnp.zeros((n_pad, H), jnp.float32).at[:N].set(node)
    gi_nodes = input_projection(node_pad, params["bias"], wih_all)[:N]     # (N, 6H)
    gi_nodes = gi_nodes.reshape(N, 6, H)

    # ---- Vectorized segment padding: one scatter into (B_pad, T, 6, H), zeros at pads.
    b_pad = ((B + tile_b - 1) // tile_b) * tile_b
    gi_pad = jnp.zeros((b_pad, T, 6, H), jnp.float32)
    gi_pad = gi_pad.at[batch_idx_j, time_idx_j].set(gi_nodes)
    gi_pad = jnp.transpose(gi_pad, (2, 1, 0, 3))                           # (6, T, B_pad, H)

    # ---- h0: per-segment max of the raw node features (shared by both directions).
    h0 = jax.ops.segment_max(node, batch_idx_j, num_segments=B)            # (B, H)
    h0 = jnp.zeros((b_pad, H), jnp.float32).at[:B].set(h0)

    # ---- Kernel B: fused bidirectional recurrence.
    out = bidir_gru(gi_pad, h0, whh_all, bih_all, bhh_all, tile_b=tile_b)  # (2, T, B_pad, H)

    # (2,T,B,H) -> (B,T,2H) with [fwd | bwd] on the feature axis, then one gather unpad.
    out_bth = jnp.transpose(out, (2, 1, 0, 3)).reshape(b_pad, T, 2 * H)
    return out_bth[batch_idx_j, time_idx_j]                                # (N, 2H)


# ----------------------------- pure-JAX reference -----------------------------

def _gru_direction_ref(x_tbh, h0, wih, whh, bih, bhh):
    H = h0.shape[-1]

    def step(h, x_t):
        gi = x_t @ wih + bih
        gh = h @ whh + bhh
        r = jax.nn.sigmoid(gi[:, :H] + gh[:, :H])
        z = jax.nn.sigmoid(gi[:, H:2 * H] + gh[:, H:2 * H])
        n = jnp.tanh(gi[:, 2 * H:] + r * gh[:, 2 * H:])
        h_new = (1.0 - z) * n + z * h
        return h_new, h_new

    _, ys = lax.scan(step, h0, x_tbh)
    return ys


def batch_gru_forward_ref(node, a_scope, params):
    N, H = node.shape
    B = len(a_scope)
    T = int(max(a_scope))
    message = jnp.maximum(node + params["bias"][None, :], 0.0)
    starts = np.concatenate([[0], np.cumsum(a_scope)[:-1]]).astype(int)
    msg_padded = jnp.zeros((B, T, H), jnp.float32)
    h0_rows = []
    for b, (s, L) in enumerate(zip(starts, a_scope)):
        s, L = int(s), int(L)
        msg_padded = msg_padded.at[b, :L, :].set(message[s:s + L])
        h0_rows.append(jnp.max(node[s:s + L], axis=0))
    h0 = jnp.stack(h0_rows, axis=0)
    x_tbh = jnp.transpose(msg_padded, (1, 0, 2))
    out_f = _gru_direction_ref(x_tbh, h0, params["wih_f"], params["whh_f"],
                               params["bih_f"], params["bhh_f"])
    out_b = _gru_direction_ref(x_tbh[::-1], h0, params["wih_b"], params["whh_b"],
                               params["bih_b"], params["bhh_b"])[::-1]
    out_bth = jnp.transpose(jnp.concatenate([out_f, out_b], axis=-1), (1, 0, 2))
    pieces = [out_bth[b, :int(L), :] for b, L in enumerate(a_scope)]
    return jnp.concatenate(pieces, axis=0)


# ----------------------------- main -----------------------------

if __name__ == "__main__":
    key = jax.random.PRNGKey(0)
    # 16 segments (two sublane-aligned batch tiles of 8), max length 8, 79 nodes total.
    a_scope = [3, 5, 8, 4, 6, 2, 7, 5, 3, 4, 6, 8, 2, 5, 7, 4]
    N = int(sum(a_scope))
    H = HIDDEN

    k_node, k_par = jax.random.split(key)
    node = jax.random.normal(k_node, (N, H), jnp.float32)
    params = init_params(k_par, H)

    out = batch_gru_forward(node, a_scope, params)
    out = jax.block_until_ready(out)
    assert out.shape == (N, 2 * H), out.shape

    ref = batch_gru_forward_ref(node, a_scope, params)
    np.testing.assert_allclose(np.asarray(out), np.asarray(ref),
                               rtol=2e-3, atol=2e-3)
    print("KERNEL_OK")
</pallas_src>

<mosaic_0001>
module attributes {stable_mosaic.version = 11 : i64} {
  func.func @_input_proj_kernel(%arg0: memref<80x32xf32, #tpu.memory_space<vmem>>, %arg1: memref<1x32xf32, #tpu.memory_space<vmem>>, %arg2: memref<32x192xf32, #tpu.memory_space<vmem>>, %arg3: memref<80x192xf32, #tpu.memory_space<vmem>>) attributes {dimension_semantics = [], scalar_prefetch = 0 : i64, scratch_operands = 0 : i64, tpu.core_type = #tpu.core_type<tc>} {
    %c0 = arith.constant 0 : index
    %c0_0 = arith.constant 0 : index
    %0 = vector.load %arg0[%c0, %c0_0] : memref<80x32xf32, #tpu.memory_space<vmem>>, vector<80x32xf32>
    %c0_1 = arith.constant 0 : index
    %c0_2 = arith.constant 0 : index
    %1 = vector.load %arg1[%c0_1, %c0_2] : memref<1x32xf32, #tpu.memory_space<vmem>>, vector<1x32xf32>
    %2 = vector.broadcast %1 : vector<1x32xf32> to vector<80x32xf32>
    %3 = arith.addf %0, %2 : vector<80x32xf32>
    %cst = arith.constant 0.000000e+00 : f32
    %4 = vector.broadcast %cst : f32 to vector<80x32xf32>
    %5 = arith.maximumf %3, %4 : vector<80x32xf32>
    %c0_3 = arith.constant 0 : index
    %c0_4 = arith.constant 0 : index
    %6 = vector.load %arg2[%c0_3, %c0_4] : memref<32x192xf32, #tpu.memory_space<vmem>>, vector<32x192xf32>
    %cst_5 = arith.constant dense<0.000000e+00> : vector<80x192xf32>
    %7 = tpu.matmul %5, %6, %cst_5 {dimension_numbers = #tpu.dot_dimension_numbers<[1], [0], [0], [1], [0, 0, 1, 1], [], []>} : vector<80x32xf32>, vector<32x192xf32>, vector<80x192xf32> -> vector<80x192xf32>
    %c0_6 = arith.constant 0 : index
    %c0_7 = arith.constant 0 : index
    %8 = vector.load %arg3[%c0_6, %c0_7] : memref<80x192xf32, #tpu.memory_space<vmem>>, vector<80x192xf32>
    tpu.vector_store %arg3[%c0_6, %c0_7], %7 {strides = array<i32>} : memref<80x192xf32, #tpu.memory_space<vmem>>, vector<80x192xf32>,
    return
  }
}

</mosaic_0001>

<llo_original>
// kernel: tpu_custom_call.1
$region0: #{tpu_custom_call.1}
  #allocation0 [shape = 'u32[]', space=smem, size = 0x4, offset = 0x4, fixed_abs, tag = 'smem constant byte address 0x4 - core index']
  #allocation1 [shape = 'u32[144,128]{1,0:T(1,128)}', space=vmem, size = 0x12000, scoped, tag = 'internal scratch']
  %s0 = inlined_call_operand.vmem [shape: f32[80,32], index: 0, kind: input, shape index: {}]
  %s1 = inlined_call_operand.vmem [shape: f32[1,32], index: 1, kind: input, shape index: {}]
  %s2 = inlined_call_operand.vmem [shape: f32[32,192], index: 2, kind: input, shape index: {}]
  %s3 = inlined_call_operand.hbm [shape: f32[80,192], index: 3, kind: output, shape index: {}]
  %s4 = sld [smem:[#allocation0]]
  $region22: #{tpu_custom_call.1} parent=0
    _
  %s6 = ssub.s32 1, %s4
  %s7 = scalar_select 0, %s6, %s4
  $region1: #{tpu_custom_call.1} parent=0
    #allocation2 [shape = 'u8[81920]{0}', space=vmem, size = 0x14000, scoped, tag = 'output window, operand 0, single buffered']
    #allocation3 [shape = 's32[1]{0}', space=sflag, size = 0x4, scoped, tag = 'scoped memory for tpu_custom_call.1']
    %8 = vsyncpa [#allocation3], 0
    // Predicated region
    $region2: #{tpu_custom_call.1} parent=1 // pred_check
      _
    $region3: #{tpu_custom_call.1} parent=1 // pred_check_branch
      %10 = sbr.rel (0) target = $region5
    $region4: #{tpu_custom_call.1} parent=1 // pred_region
      _
    $region5: #{tpu_custom_call.1} parent=1 // pred_fallthru
      _
    // Predicated region
    $region6: #{tpu_custom_call.1} parent=1 // pred_check
      _
    $region7: #{tpu_custom_call.1} parent=1 // pred_check_branch
      %12 = sbr.rel (0) target = $region9
    $region8: #{tpu_custom_call.1} parent=1 // pred_region
      _
    $region9: #{tpu_custom_call.1} parent=1 // pred_fallthru
      _
    // Predicated region
    $region10: #{tpu_custom_call.1} parent=1 // pred_check
      _
    $region11: #{tpu_custom_call.1} parent=1 // pred_check_branch
      %14 = sbr.rel (0) target = $region13
    $region12: #{tpu_custom_call.1} parent=1 // pred_region
      _
    $region13: #{tpu_custom_call.1} parent=1 // pred_fallthru
      _
    %v15 = vld [vmem:[%s0] sm:$0xff]
    %v16 = vld [vmem:[%s0 + $0x8] sm:$0xff]
    %v17 = vld [vmem:[%s0 + $0x10] sm:$0xff]
    %v18 = vld [vmem:[%s0 + $0x18] sm:$0xff]
    %v19 = vld [vmem:[%s0 + $0x20] sm:$0xff]
    %v20 = vld [vmem:[%s0 + $0x28] sm:$0xff]
    %v21 = vld [vmem:[%s0 + $0x30] sm:$0xff]
    %v22 = vld [vmem:[%s0 + $0x38] sm:$0xff]
    %v23 = vld [vmem:[%s0 + $0x40] sm:$0xff]
    %v24 = vld [vmem:[%s0 + $0x48] sm:$0xff]
    %v25 = vld [vmem:[%s1] sm:$0x1]
    %v27 = vlaneseq
    %v28 = vshrl.u32 %v27, 7
    %v29 = vsub.s32 0, %v28
    %v30 = vrot.slane %v25, %v29
    %v32 = vadd.f32 %v15, %v30
    %v33 = vadd.f32 %v16, %v30
    %v34 = vadd.f32 %v17, %v30
    %v35 = vadd.f32 %v18, %v30
    %v36 = vadd.f32 %v19, %v30
    %v37 = vadd.f32 %v20, %v30
    %v38 = vadd.f32 %v21, %v30
    %v39 = vadd.f32 %v22, %v30
    %v40 = vadd.f32 %v23, %v30
    %v41 = vadd.f32 %v24, %v30
    %v42 = vmax.f32 %v32, 0.0
    %v43 = vmax.f32 %v33, 0.0
    %v44 = vmax.f32 %v34, 0.0
    %v45 = vmax.f32 %v35, 0.0
    %v46 = vmax.f32 %v36, 0.0
    %v47 = vmax.f32 %v37, 0.0
    %v48 = vmax.f32 %v38, 0.0
    %v49 = vmax.f32 %v39, 0.0
    %v50 = vmax.f32 %v40, 0.0
    %v51 = vmax.f32 %v41, 0.0
    %v52 = vld [vmem:[%s2] sm:$0xff]
    %v53 = vld [vmem:[%s2 + $0x8] sm:$0xff]
    %v54 = vld [vmem:[%s2 + $0x10] sm:$0xff]
    %v55 = vld [vmem:[%s2 + $0x18] sm:$0xff]
    %v56 = vld [vmem:[%s2 + $0x20] sm:$0xff]
    %v57 = vld [vmem:[%s2 + $0x28] sm:$0xff]
    %v58 = vld [vmem:[%s2 + $0x30] sm:$0xff]
    %v59 = vld [vmem:[%s2 + $0x38] sm:$0xff]
    %vm60 = vcmask 261120
    %v62 = vsel %vm60, %v42, 0
    %v65 = vsel %vm60, %v43, 0
    %v68 = vsel %vm60, %v44, 0
    %v71 = vsel %vm60, %v45, 0
    %v74 = vsel %vm60, %v46, 0
    %v77 = vsel %vm60, %v47, 0
    %v80 = vsel %vm60, %v48, 0
    %v83 = vsel %vm60, %v49, 0
    %v86 = vsel %vm60, %v50, 0
    %v89 = vsel %vm60, %v51, 0
    %91 = vmatprep.subr.mxu0 %v53
    %92 = vmatpush1.msra.mxu0 %v52
    %93 = vmatprep.subr.mxu0 %v55
    %94 = vmatpush1.msra.mxu0 %v54
    %95 = vmatprep.subr.mxu0 %v57
    %96 = vmatpush1.msra.mxu0 %v56
    %97 = vmatprep.subr.mxu0 %v59
    %98 = vmatpush1.msra.mxu0 %v58
    %99 = vmatprep.subr.mxu0 0.0
    %100 = vmatpush1.msra.mxu0 0.0
    %101 = vmatprep.subr.mxu0 0.0
    %102 = vmatpush1.msra.mxu0 0.0
    %103 = vmatprep.subr.mxu0 0.0
    %104 = vmatpush1.msra.mxu0 0.0
    %105 = vmatprep.subr.mxu0 0.0
    %106 = vmatpush1.msra.mxu0 0.0
    %107 = vmatprep.subr.mxu0 0.0
    %108 = vmatpush1.msra.mxu0 0.0
    %109 = vmatprep.subr.mxu0 0.0
    %110 = vmatpush1.msra.mxu0 0.0
    %111 = vmatprep.subr.mxu0 0.0
    %112 = vmatpush1.msra.mxu0 0.0
    %113 = vmatprep.subr.mxu0 0.0
    %114 = vmatpush1.msra.mxu0 0.0
    %115 = vmatprep.subr.mxu0 0.0
    %116 = vmatpush1.msra.mxu0 0.0
    %117 = vmatprep.subr.mxu0 0.0
    %118 = vmatpush1.msra.mxu0 0.0
    %119 = vmatprep.subr.mxu0 0.0
    %120 = vmatpush1.msra.mxu0 0.0
    %121 = vmatprep.subr.mxu0 0.0
    %122 = vmatpush1.msra.mxu0 0.0
    %123 = vmatprep.subr.mxu0 0.0
    %124 = vmatpush1.msra.mxu0 0.0
    %125 = vmatprep.subr.mxu0 0.0
    %126 = vmatpush1.msra.mxu0 0.0
    %127 = vmatprep.subr.mxu0 0.0
    %128 = vmatpush1.msra.mxu0 0.0
    %129 = vmatprep.subr.mxu0 0.0
    %130 = vmatpush1.msra.mxu0 0.0
    %131 = vmatprep.subr.mxu0 0.0
    %132 = vmatpush1.msra.mxu0 0.0
    %133 = vmatprep.subr.mxu0 0.0
    %134 = vmatpush1.msra.mxu0 0.0
    %135 = vmatprep.subr.mxu0 0.0
    %136 = vmatpush1.msra.mxu0 0.0
    %137 = vmatprep.subr.mxu0 0.0
    %138 = vmatpush1.msra.mxu0 0.0
    %139 = vmatprep.subr.mxu0 0.0
    %140 = vmatpush1.msra.mxu0 0.0
    %141 = vmatprep.subr.mxu0 0.0
    %142 = vmatpush1.msra.mxu0 0.0
    %143 = vmatprep.subr.mxu0 0.0
    %144 = vmatpush1.msra.mxu0 0.0
    %145 = vmatprep.subr.mxu0 0.0
    %146 = vmatpush1.msra.mxu0 0.0
    %147 = vmatprep.subr.mxu0 0.0
    %148 = vmatpush1.msra.mxu0 0.0
    %149 = vmatprep.subr.mxu0 0.0
    %150 = vmatpush1.msra.mxu0 0.0
    %151 = vmatprep.subr.mxu0 0.0
    %152 = vmatpush1.msra.mxu0 0.0
    %153 = vmatprep.subr.mxu0 0.0
    %154 = vmatpush1.msra.mxu0 0.0
    %155 = vmatprep.mubr.f32.mxu0 0.0
    %156 = vmatmul.mubr.f32.gmra.mrb[0].mxu0 %v62
    %v157 = vpop.f32.mrb[0].mxu0
    %v158 = vadd.f32 0.0, %v157
    %v159 = vpop.f32.mrb[0].mxu0
    %v160 = vadd.f32 0.0, %v159
    %161 = vmatprep.mubr.f32.mxu0 0.0
    %162 = vmatmul.mubr.f32.gmra.mrb[0].mxu0 %v65
    %v163 = vpop.f32.mrb[0].mxu0
    %v164 = vadd.f32 0.0, %v163
    %v165 = vpop.f32.mrb[0].mxu0
    %v166 = vadd.f32 0.0, %v165
    %167 = vmatprep.mubr.f32.mxu0 0.0
    %168 = vmatmul.mubr.f32.gmra.mrb[0].mxu0 %v68
    %v169 = vpop.f32.mrb[0].mxu0
    %v170 = vadd.f32 0.0, %v169
    %v171 = vpop.f32.mrb[0].mxu0
    %v172 = vadd.f32 0.0, %v171
    %173 = vmatprep.mubr.f32.mxu0 0.0
    %174 = vmatmul.mubr.f32.gmra.mrb[0].mxu0 %v71
    %v175 = vpop.f32.mrb[0].mxu0
    %v176 = vadd.f32 0.0, %v175
    %v177 = vpop.f32.mrb[0].mxu0
    %v178 = vadd.f32 0.0, %v177
    %179 = vmatprep.mubr.f32.mxu0 0.0
    %180 = vmatmul.mubr.f32.gmra.mrb[0].mxu0 %v74
    %v181 = vpop.f32.mrb[0].mxu0
    %v182 = vadd.f32 0.0, %v181
    %v183 = vpop.f32.mrb[0].mxu0
    %v184 = vadd.f32 0.0, %v183
    %185 = vmatprep.mubr.f32.mxu0 0.0
    %186 = vmatmul.mubr.f32.gmra.mrb[0].mxu0 %v77
    %v187 = vpop.f32.mrb[0].mxu0
    %v188 = vadd.f32 0.0, %v187
    %v189 = vpop.f32.mrb[0].mxu0
    %v190 = vadd.f32 0.0, %v189
    %191 = vmatprep.mubr.f32.mxu0 0.0
    %192 = vmatmul.mubr.f32.gmra.mrb[0].mxu0 %v80
    %v193 = vpop.f32.mrb[0].mxu0
    %v194 = vadd.f32 0.0, %v193
    %v195 = vpop.f32.mrb[0].mxu0
    %v196 = vadd.f32 0.0, %v195
    %197 = vmatprep.mubr.f32.mxu0 0.0
    %198 = vmatmul.mubr.f32.gmra.mrb[0].mxu0 %v83
    %v199 = vpop.f32.mrb[0].mxu0
    %v200 = vadd.f32 0.0, %v199
    %v201 = vpop.f32.mrb[0].mxu0
    %v202 = vadd.f32 0.0, %v201
    %203 = vmatprep.mubr.f32.mxu0 0.0
    %204 = vmatmul.mubr.f32.gmra.mrb[0].mxu0 %v86
    %v205 = vpop.f32.mrb[0].mxu0
    %v206 = vadd.f32 0.0, %v205
    %v207 = vpop.f32.mrb[0].mxu0
    %v208 = vadd.f32 0.0, %v207
    %209 = vmatprep.mubr.f32.mxu0 0.0
    %210 = vmatmul.mubr.f32.gmra.mrb[0].mxu0 %v89
    %v211 = vpop.f32.mrb[0].mxu0
    %v212 = vadd.f32 0.0, %v211
    %v213 = vpop.f32.mrb[0].mxu0
    %v214 = vadd.f32 0.0, %v213
    %215 = vdwg.mxu0
    %216 = vst [vmem:[#allocation2] sm:$0xff] %v158
    %vm217 = vcmask 523264
    %218 = vst.msk [vmem:[#allocation2 + $0x8] sm:$0xff] %vm217, %v160
    %219 = vst [vmem:[#allocation2 + $0x10] sm:$0xff] %v164
    %220 = vst.msk [vmem:[#allocation2 + $0x18] sm:$0xff] %vm217, %v166
    %221 = vst [vmem:[#allocation2 + $0x20] sm:$0xff] %v170
    %222 = vst.msk [vmem:[#allocation2 + $0x28] sm:$0xff] %vm217, %v172
    %223 = vst [vmem:[#allocation2 + $0x30] sm:$0xff] %v176
    %224 = vst.msk [vmem:[#allocation2 + $0x38] sm:$0xff] %vm217, %v178
    %225 = vst [vmem:[#allocation2 + $0x40] sm:$0xff] %v182
    %226 = vst.msk [vmem:[#allocation2 + $0x48] sm:$0xff] %vm217, %v184
    %227 = vst [vmem:[#allocation2 + $0x50] sm:$0xff] %v188
    %228 = vst.msk [vmem:[#allocation2 + $0x58] sm:$0xff] %vm217, %v190
    %229 = vst [vmem:[#allocation2 + $0x60] sm:$0xff] %v194
    %230 = vst.msk [vmem:[#allocation2 + $0x68] sm:$0xff] %vm217, %v196
    %231 = vst [vmem:[#allocation2 + $0x70] sm:$0xff] %v200
    %232 = vst.msk [vmem:[#allocation2 + $0x78] sm:$0xff] %vm217, %v202
    %233 = vst [vmem:[#allocation2 + $0x80] sm:$0xff] %v206
    %234 = vst.msk [vmem:[#allocation2 + $0x88] sm:$0xff] %vm217, %v208
    %235 = vst [vmem:[#allocation2 + $0x90] sm:$0xff] %v212
    %236 = vst.msk [vmem:[#allocation2 + $0x98] sm:$0xff] %vm217, %v214
    // Predicated region
    $region14: #{tpu_custom_call.1} parent=1 // pred_check
      _
    $region15: #{tpu_custom_call.1} parent=1 // pred_check_branch
      %238 = sbr.rel (0) target = $region17
    $region16: #{tpu_custom_call.1} parent=1 // pred_region
      %s240 = ssub.s32 2560, 2560
      %241 = vsyncadd [#allocation3], %s240
      %s242 = sshll.u32 [#allocation2], 4
      %s243 = int_to_ptr.vmem [resolvable:$true] %s242
      %248 = dma.vmem_to_hbm [thread:$0]  %s243, 2560, %s3, [#allocation3], 256, 256, 16
    $region17: #{tpu_custom_call.1} parent=1 // pred_fallthru
      _
    // Predicated region
    $region18: #{tpu_custom_call.1} parent=1 // pred_check
      _
    $region19: #{tpu_custom_call.1} parent=1 // pred_check_branch
      %250 = sbr.rel (0) target = $region21
    $region20: #{tpu_custom_call.1} parent=1 // pred_region
      %251 = dma.done [#allocation3], 2560
    $region21: #{tpu_custom_call.1} parent=1 // pred_fallthru
      _
    %252 = vsyncpa [#allocation3], 1

</llo_original>
